<compile_context>
chip_gen: v6e
topology: v6e:2x2x1
jax: 0.10.0
libtpu: 0.0.40
codegen_flags: <defaults>
</compile_context>

<pallas_src>
import functools

import jax
import jax.numpy as jnp
from jax.experimental import pallas as pl
from jax.experimental.pallas import tpu as pltpu


def _round_up(x, m):
    return (x + m - 1) // m * m


# ----------------------------------------------------------------------------
# Pallas kernel: LayerNorm (affine + mean folded into the projection) + Linear
# ----------------------------------------------------------------------------
def _spt_kernel(x_ref, w_ref, cs_ref, b_ref, o_ref, *, inv_patch_dim, eps):
    x = x_ref[...].astype(jnp.float32)                     # (tm, K), K = patch_dim

    # One-pass moments over the true feature axis (no padded lanes exist).
    s1 = jnp.sum(x, axis=-1, keepdims=True)
    s2 = jnp.sum(x * x, axis=-1, keepdims=True)
    mean = s1 * inv_patch_dim
    var = s2 * inv_patch_dim - mean * mean
    inv = jax.lax.rsqrt(var + eps)                         # EUP rsqrt

    # y = ((x - mean) * inv) @ W' + b'
    #   = (x * inv) @ W' - (mean * inv) * colsum(W') + b'
    y = jnp.dot(x * inv, w_ref[...], preferred_element_type=jnp.float32)
    y = y - (mean * inv) * cs_ref[...] + b_ref[...]
    o_ref[...] = y.astype(o_ref.dtype)


def prepare_spt_params(params):
    """Fold the LayerNorm affine into the projection.  Call ONCE when the
    parameters are set/updated — not on the per-forward hot path."""
    gamma = params["gamma"].astype(jnp.float32)            # (patch_dim,)
    beta = params["beta"].astype(jnp.float32)              # (patch_dim,)
    w = params["weight"].astype(jnp.float32)               # (patch_dim, dim)
    b = params["bias"].astype(jnp.float32)                 # (dim,)
    w_f = gamma[:, None] * w                               # (patch_dim, dim)
    b_f = (beta @ w + b).reshape(1, -1)                    # (1, dim)
    colsum = jnp.sum(w_f, axis=0, keepdims=True)           # (1, dim)
    return {"w": w_f, "b": b_f, "colsum": colsum}


def spt_tokens_pallas(tokens, prepared, *, tm=1024, eps=1e-5):
    """tokens: (M, patch_dim) -> (M, dim) = Linear(LayerNorm(tokens))."""
    M, patch_dim = tokens.shape
    w_f = prepared["w"]
    dim = w_f.shape[1]

    # Large row tile (amortizes per-grid-step overhead), multiple of 8, but
    # capped so the grid has at least 2 steps (v7x megacore sharding).
    tm = max(8, min(tm, _round_up(pl.cdiv(M, 2), 8)))
    grid = (pl.cdiv(M, tm),)

    kernel = functools.partial(_spt_kernel,
                               inv_patch_dim=1.0 / patch_dim, eps=eps)

    return pl.pallas_call(
        kernel,
        out_shape=jax.ShapeDtypeStruct((M, dim), tokens.dtype),
        grid_spec=pltpu.PrefetchScalarGridSpec(
            num_scalar_prefetch=0,
            grid=grid,
            in_specs=[
                pl.BlockSpec((tm, patch_dim), lambda i: (i, 0)),   # token rows
                pl.BlockSpec((patch_dim, dim), lambda i: (0, 0)),  # folded W'
                pl.BlockSpec((1, dim), lambda i: (0, 0)),          # colsum(W')
                pl.BlockSpec((1, dim), lambda i: (0, 0)),          # folded bias
            ],
            out_specs=pl.BlockSpec((tm, dim), lambda i: (i, 0)),
        ),
        compiler_params=pltpu.CompilerParams(
            dimension_semantics=("parallel",)),
    )(tokens, w_f, prepared["colsum"], prepared["b"])


# ----------------------------------------------------------------------------
# Glue: shifted copies + channel concat + patch rearrange, done once in NHWC
# ----------------------------------------------------------------------------
@functools.partial(jax.jit, static_argnames=("patch_size",))
def spt_forward(x, prepared, *, patch_size):
    """x: (B, C, H, W) NCHW  ->  (B, num_patches, dim)."""
    B, C, H, W = x.shape
    p = patch_size
    assert H % p == 0 and W % p == 0

    # NHWC once; the 4 shifts are slices of a single zero-padded array.
    xh = jnp.transpose(x, (0, 2, 3, 1))                           # (B,H,W,C)
    P = jnp.pad(xh, ((0, 0), (1, 1), (1, 1), (0, 0)))
    views = (
        xh,                                  # original
        P[:, 1:H + 1, 0:W, :],               # F.pad (1,-1,0,0): shift +w
        P[:, 1:H + 1, 2:W + 2, :],           # F.pad (-1,1,0,0): shift -w
        P[:, 0:H, 1:W + 1, :],               # F.pad (0,0,1,-1): shift +h
        P[:, 2:H + 2, 1:W + 1, :],           # F.pad (0,0,-1,1): shift -h
    )
    x_cat = jnp.concatenate(views, axis=-1)                       # (B,H,W,5C)

    h, w = H // p, W // p
    C5 = 5 * C
    # 'b (h p1) (w p2) c -> (b h w) (p1 p2 c)'  (== torch rearrange on NCHW)
    t = x_cat.reshape(B, h, p, w, p, C5)
    t = jnp.transpose(t, (0, 1, 3, 2, 4, 5))                      # b h w p1 p2 c
    tokens = t.reshape(B * h * w, p * p * C5)                     # (B*N, patch_dim)

    out = spt_tokens_pallas(tokens, prepared)
    return out.reshape(B, h * w, -1)


# ----------------------------------------------------------------------------
# Pure-JAX reference mirroring the PyTorch module (NCHW path, no folding)
# ----------------------------------------------------------------------------
def _pad_shift(x, pads):
    """F.pad(x, pads) on NCHW with pads=(w_left, w_right, h_top, h_bot)."""
    wl, wr, ht, hb = pads
    x = jnp.pad(
        x,
        ((0, 0), (0, 0),
         (max(ht, 0), max(hb, 0)),
         (max(wl, 0), max(wr, 0))),
    )
    H, W = x.shape[2], x.shape[3]
    h0, h1 = -min(ht, 0), H + min(hb, 0)
    w0, w1 = -min(wl, 0), W + min(wr, 0)
    return x[:, :, h0:h1, w0:w1]


def spt_reference(x, params, *, patch_size):
    B, C, H, W = x.shape
    p = patch_size
    shifts = ((1, -1, 0, 0), (-1, 1, 0, 0), (0, 0, 1, -1), (0, 0, -1, 1))
    shifted = [_pad_shift(x, s) for s in shifts]
    x_cat = jnp.concatenate((x, *shifted), axis=1)
    C5 = 5 * C
    h, w = H // p, W // p
    t = x_cat.reshape(B, C5, h, p, w, p)
    t = jnp.transpose(t, (0, 2, 4, 3, 5, 1)).reshape(B, h * w, p * p * C5)
    mean = jnp.mean(t, axis=-1, keepdims=True)
    var = jnp.mean((t - mean) ** 2, axis=-1, keepdims=True)
    tn = (t - mean) / jnp.sqrt(var + 1e-5)
    tn = tn * params["gamma"] + params["beta"]
    return tn @ params["weight"] + params["bias"]


# ----------------------------------------------------------------------------
if __name__ == "__main__":
    # Shapes consistent with the module: B=2, channels=3 (default), 16x16
    # image, patch_size=4 -> patch_dim = 4*4*5*3 = 240, dim = 32.
    B, C, H, W = 2, 3, 16, 16
    patch_size = 4
    dim = 32
    patch_dim = patch_size * patch_size * 5 * C

    key = jax.random.PRNGKey(0)
    kx, kw, kb, kg, kbeta = jax.random.split(key, 5)

    x = jax.random.normal(kx, (B, C, H, W), dtype=jnp.float32)

    bound = 1.0 / (patch_dim ** 0.5)
    params = {
        # non-trivial gamma/beta so the affine-fold path is actually exercised
        "gamma": 1.0 + 0.1 * jax.random.normal(kg, (patch_dim,), jnp.float32),
        "beta": 0.1 * jax.random.normal(kbeta, (patch_dim,), jnp.float32),
        # stored as (patch_dim, dim) == torch weight (dim, patch_dim) transposed
        "weight": jax.random.uniform(kw, (patch_dim, dim), jnp.float32,
                                     -bound, bound),
        "bias": jax.random.uniform(kb, (dim,), jnp.float32, -bound, bound),
    }

    # Parameter folding done once, outside the per-forward hot path.
    prepared = prepare_spt_params(params)
    prepared = jax.tree_util.tree_map(jax.block_until_ready, prepared)

    out = spt_forward(x, prepared, patch_size=patch_size)
    out = jax.block_until_ready(out)

    ref = spt_reference(x, params, patch_size=patch_size)
    assert out.shape == (B, (H // patch_size) * (W // patch_size), dim)
    assert jnp.allclose(out, ref, atol=2e-4, rtol=2e-4)

    print("KERNEL_OK")
</pallas_src>

<mosaic_0001>
module attributes {stable_mosaic.version = 11 : i64} {
  func.func @_spt_kernel(%arg0: i32, %arg1: memref<16x240xf32, #tpu.memory_space<vmem>>, %arg2: memref<240x32xf32, #tpu.memory_space<vmem>>, %arg3: memref<1x32xf32, #tpu.memory_space<vmem>>, %arg4: memref<1x32xf32, #tpu.memory_space<vmem>>, %arg5: memref<16x32xf32, #tpu.memory_space<vmem>>) attributes {dimension_semantics = [#tpu.dimension_semantics<parallel>], iteration_bounds = array<i64: 2>, scalar_prefetch = 0 : i64, scratch_operands = 0 : i64, tpu.core_type = #tpu.core_type<tc>, window_params = [{transform_indices = @transform_0, window_bounds = array<i64: 16, 240>}, {pipeline_mode = #tpu.pipeline_mode<synchronous>, transform_indices = @transform_1, window_bounds = array<i64: 240, 32>}, {pipeline_mode = #tpu.pipeline_mode<synchronous>, transform_indices = @transform_2, window_bounds = array<i64: 1, 32>}, {pipeline_mode = #tpu.pipeline_mode<synchronous>, transform_indices = @transform_3, window_bounds = array<i64: 1, 32>}, {transform_indices = @transform_4, window_bounds = array<i64: 16, 32>}]} {
    %c0 = arith.constant 0 : index
    %c0_0 = arith.constant 0 : index
    %0 = vector.load %arg1[%c0, %c0_0] : memref<16x240xf32, #tpu.memory_space<vmem>>, vector<16x240xf32>
    %cst = arith.constant dense<0.000000e+00> : vector<16xf32>
    %1 = vector.multi_reduction <add>, %0, %cst [1] : vector<16x240xf32> to vector<16xf32>
    %2 = vector.shape_cast %1 : vector<16xf32> to vector<16x1xf32>
    %3 = arith.mulf %0, %0 : vector<16x240xf32>
    %cst_1 = arith.constant dense<0.000000e+00> : vector<16xf32>
    %4 = vector.multi_reduction <add>, %3, %cst_1 [1] : vector<16x240xf32> to vector<16xf32>
    %5 = vector.shape_cast %4 : vector<16xf32> to vector<16x1xf32>
    %cst_2 = arith.constant 0.00416666688 : f32
    %6 = vector.broadcast %cst_2 : f32 to vector<16x1xf32>
    %7 = arith.mulf %2, %6 : vector<16x1xf32>
    %cst_3 = arith.constant 0.00416666688 : f32
    %8 = vector.broadcast %cst_3 : f32 to vector<16x1xf32>
    %9 = arith.mulf %5, %8 : vector<16x1xf32>
    %10 = arith.mulf %7, %7 : vector<16x1xf32>
    %11 = arith.subf %9, %10 : vector<16x1xf32>
    %cst_4 = arith.constant 9.99999974E-6 : f32
    %12 = vector.broadcast %cst_4 : f32 to vector<16x1xf32>
    %13 = arith.addf %11, %12 : vector<16x1xf32>
    %14 = math.rsqrt %13 : vector<16x1xf32>
    %15 = vector.broadcast %14 : vector<16x1xf32> to vector<16x240xf32>
    %16 = arith.mulf %0, %15 : vector<16x240xf32>
    %c0_5 = arith.constant 0 : index
    %c0_6 = arith.constant 0 : index
    %17 = vector.load %arg2[%c0_5, %c0_6] : memref<240x32xf32, #tpu.memory_space<vmem>>, vector<240x32xf32>
    %cst_7 = arith.constant dense<0.000000e+00> : vector<16x32xf32>
    %18 = tpu.matmul %16, %17, %cst_7 {dimension_numbers = #tpu.dot_dimension_numbers<[1], [0], [0], [1], [0, 0, 1, 1], [], []>} : vector<16x240xf32>, vector<240x32xf32>, vector<16x32xf32> -> vector<16x32xf32>
    %19 = arith.mulf %7, %14 : vector<16x1xf32>
    %c0_8 = arith.constant 0 : index
    %c0_9 = arith.constant 0 : index
    %20 = vector.load %arg3[%c0_8, %c0_9] : memref<1x32xf32, #tpu.memory_space<vmem>>, vector<1x32xf32>
    %21 = vector.broadcast %19 : vector<16x1xf32> to vector<16x32xf32>
    %22 = vector.broadcast %20 : vector<1x32xf32> to vector<16x32xf32>
    %23 = arith.mulf %21, %22 : vector<16x32xf32>
    %24 = arith.subf %18, %23 : vector<16x32xf32>
    %c0_10 = arith.constant 0 : index
    %c0_11 = arith.constant 0 : index
    %25 = vector.load %arg4[%c0_10, %c0_11] : memref<1x32xf32, #tpu.memory_space<vmem>>, vector<1x32xf32>
    %26 = vector.broadcast %25 : vector<1x32xf32> to vector<16x32xf32>
    %27 = arith.addf %24, %26 : vector<16x32xf32>
    %c0_12 = arith.constant 0 : index
    %c0_13 = arith.constant 0 : index
    %28 = vector.load %arg5[%c0_12, %c0_13] : memref<16x32xf32, #tpu.memory_space<vmem>>, vector<16x32xf32>
    tpu.vector_store %arg5[%c0_12, %c0_13], %27 {strides = array<i32>} : memref<16x32xf32, #tpu.memory_space<vmem>>, vector<16x32xf32>,
    return
  }
  func.func @transform_0(%arg0: i32) -> (i32, i32) {
    %c0_i32 = arith.constant 0 : i32
    %c0_i32_0 = arith.constant 0 : i32
    return %arg0, %c0_i32 : i32, i32
  }
  func.func @transform_1(%arg0: i32) -> (i32, i32) {
    %c0_i32 = arith.constant 0 : i32
    %c0_i32_0 = arith.constant 0 : i32
    %c0_i32_1 = arith.constant 0 : i32
    return %c0_i32, %c0_i32_0 : i32, i32
  }
  func.func @transform_2(%arg0: i32) -> (i32, i32) {
    %c0_i32 = arith.constant 0 : i32
    %c0_i32_0 = arith.constant 0 : i32
    %c0_i32_1 = arith.constant 0 : i32
    return %c0_i32, %c0_i32_0 : i32, i32
  }
  func.func @transform_3(%arg0: i32) -> (i32, i32) {
    %c0_i32 = arith.constant 0 : i32
    %c0_i32_0 = arith.constant 0 : i32
    %c0_i32_1 = arith.constant 0 : i32
    return %c0_i32, %c0_i32_0 : i32, i32
  }
  func.func @transform_4(%arg0: i32) -> (i32, i32) {
    %c0_i32 = arith.constant 0 : i32
    %c0_i32_0 = arith.constant 0 : i32
    return %arg0, %c0_i32 : i32, i32
  }
}

</mosaic_0001>

<llo_original>
// kernel: spt_forward.1
$region0: #{spt_forward.1}
  #allocation0 [shape = 'u32[]', space=smem, size = 0x4, offset = 0x4, fixed_abs, tag = 'smem constant byte address 0x4 - core index']
  #allocation1 [shape = 'u32[144,128]{1,0:T(1,128)}', space=vmem, size = 0x12000, scoped, tag = 'internal scratch']
  %s0 = inlined_call_operand.vmem [shape: f32[32,240], index: 0, kind: input, shape index: {}]
  %s1 = inlined_call_operand.vmem [shape: f32[240,32], index: 1, kind: input, shape index: {}]
  %s2 = inlined_call_operand.vmem [shape: f32[1,32], index: 2, kind: input, shape index: {}]
  %s3 = inlined_call_operand.vmem [shape: f32[1,32], index: 3, kind: input, shape index: {}]
  %s4 = inlined_call_operand.hbm [shape: f32[32,32], index: 4, kind: output, shape index: {}]
  %s5 = sld [smem:[#allocation0]]
  $region49: #{spt_forward.1} parent=0
    _
  %s7 = ssub.s32 1, %s5
  %s8 = scalar_select 0, %s7, %s5
  $region1: #{spt_forward.1} parent=0
    #allocation2 [shape = 'u8[16384]{0}', space=vmem, size = 0x4000, scoped, tag = 'output window, operand 0']
    #allocation3 [shape = 's32[2]{0}', space=sflag, size = 0x8, scoped, tag = 'scoped memory for spt_forward.1']
    %9 = vsyncpa [#allocation3], 0
    %s10 = scalar_lea.sflag [#allocation3], 1
    %11 = vsyncpa %s10, 0
    loop: start=0, step=1, limit=4
    $region2: #{spt_forward.1} parent=1 // loop_pre_header
      _
    $region3: #{spt_forward.1} parent=1 // loop_header
      %s13 = sphi 0, %s17
      %p14 = scmp.ge.s32.totalorder %s13, 4
      %s23 = sphi 0, %s25
      %s26 = sphi 0, %s23
      %s27 = sphi 0, %s26
      %s43 = sphi 0, %s27
      %s47 = sphi 0, %s47
      %s49 = sphi 0, %s47
      %s50 = sphi 0, %s49
      %s64 = sphi 0, %s50
      %s68 = sphi 0, %s68
      %s70 = sphi 0, %s68
      %s71 = sphi 0, %s70
      %s85 = sphi 0, %s71
      %s89 = sphi 0, %s89
      %s91 = sphi 0, %s89
      %s92 = sphi 0, %s91
      %s106 = sphi 0, %s92
      %s112 = sphi 0, %s114
      %s115 = sphi 0, %s112
      %s116 = sphi 0, %s115
      %s132 = sphi 0, %s116
    $region4: #{spt_forward.1} parent=1 // loop_header_branch
      %16 = sbr.rel (%p14) target = $region8
    $region5: #{spt_forward.1} parent=1 // loop_body
      %s18 = ssub.s32 %s13, 1
      %s19 = ssub.s32 %s13, 2
      %s20 = sadd.s32 %s13, 1
      %s21 = ssub.s32 %s13, %s20
      %p22 = scmp.eq.s32.totalorder %s21, 0
      %s24 = sadd.s32 %s23, 1
      %s25 = scalar_select %p22, %s23, %s24
      %p28 = pneg %p22
      %p29 = scmp.eq.s32.totalorder %s13, 1
      %p30 = por %p28, %p29
      %p31 = scmp.ne.s32.totalorder %s23, %s26
      %p32 = scmp.eq.s32.totalorder %s13, 0
      %p33 = por %p31, %p32
      %p34 = scmp.ne.s32.totalorder %s23, %s26
      %p35 = scmp.eq.s32.totalorder %s18, 1
      %p36 = por %p34, %p35
      %p37 = scmp.ne.s32.totalorder %s26, %s27
      %p38 = scmp.eq.s32.totalorder %s18, 0
      %p39 = por %p37, %p38
      %p40 = scmp.ne.s32.totalorder %s26, %s27
      %p41 = scmp.eq.s32.totalorder %s19, 1
      %p42 = por %p40, %p41
      %p44 = scmp.ne.s32.totalorder %s27, %s43
      %p45 = scmp.eq.s32.totalorder %s19, 0
      %p46 = por %p44, %p45
      %s48 = sadd.s32 %s47, 1
      %p51 = scmp.eq.s32.totalorder %s13, 1
      %p52 = scmp.ne.s32.totalorder %s47, %s49
      %p53 = scmp.eq.s32.totalorder %s13, 0
      %p54 = por %p52, %p53
      %p55 = scmp.ne.s32.totalorder %s47, %s49
      %p56 = scmp.eq.s32.totalorder %s18, 1
      %p57 = por %p55, %p56
      %p58 = scmp.ne.s32.totalorder %s49, %s50
      %p59 = scmp.eq.s32.totalorder %s18, 0
      %p60 = por %p58, %p59
      %p61 = scmp.ne.s32.totalorder %s49, %s50
      %p62 = scmp.eq.s32.totalorder %s19, 1
      %p63 = por %p61, %p62
      %p65 = scmp.ne.s32.totalorder %s50, %s64
      %p66 = scmp.eq.s32.totalorder %s19, 0
      %p67 = por %p65, %p66
      %s69 = sadd.s32 %s68, 1
      %p72 = scmp.eq.s32.totalorder %s13, 1
      %p73 = scmp.ne.s32.totalorder %s68, %s70
      %p74 = scmp.eq.s32.totalorder %s13, 0
      %p75 = por %p73, %p74
      %p76 = scmp.ne.s32.totalorder %s68, %s70
      %p77 = scmp.eq.s32.totalorder %s18, 1
      %p78 = por %p76, %p77
      %p79 = scmp.ne.s32.totalorder %s70, %s71
      %p80 = scmp.eq.s32.totalorder %s18, 0
      %p81 = por %p79, %p80
      %p82 = scmp.ne.s32.totalorder %s70, %s71
      %p83 = scmp.eq.s32.totalorder %s19, 1
      %p84 = por %p82, %p83
      %p86 = scmp.ne.s32.totalorder %s71, %s85
      %p87 = scmp.eq.s32.totalorder %s19, 0
      %p88 = por %p86, %p87
      %s90 = sadd.s32 %s89, 1
      %p93 = scmp.eq.s32.totalorder %s13, 1
      %p94 = scmp.ne.s32.totalorder %s89, %s91
      %p95 = scmp.eq.s32.totalorder %s13, 0
      %p96 = por %p94, %p95
      %p97 = scmp.ne.s32.totalorder %s89, %s91
      %p98 = scmp.eq.s32.totalorder %s18, 1
      %p99 = por %p97, %p98
      %p100 = scmp.ne.s32.totalorder %s91, %s92
      %p101 = scmp.eq.s32.totalorder %s18, 0
      %p102 = por %p100, %p101
      %p103 = scmp.ne.s32.totalorder %s91, %s92
      %p104 = scmp.eq.s32.totalorder %s19, 1
      %p105 = por %p103, %p104
      %p107 = scmp.ne.s32.totalorder %s92, %s106
      %p108 = scmp.eq.s32.totalorder %s19, 0
      %p109 = por %p107, %p108
      %s110 = ssub.s32 %s13, %s20
      %p111 = scmp.eq.s32.totalorder %s110, 0
      %s113 = sadd.s32 %s112, 1
      %s114 = scalar_select %p111, %s112, %s113
      %p117 = pneg %p111
      %p118 = scmp.eq.s32.totalorder %s13, 1
      %p119 = por %p117, %p118
      %p120 = scmp.ne.s32.totalorder %s112, %s115
      %p121 = scmp.eq.s32.totalorder %s13, 0
      %p122 = por %p120, %p121
      %p123 = scmp.ne.s32.totalorder %s112, %s115
      %p124 = scmp.eq.s32.totalorder %s18, 1
      %p125 = por %p123, %p124
      %p126 = scmp.ne.s32.totalorder %s115, %s116
      %p127 = scmp.eq.s32.totalorder %s18, 0
      %p128 = por %p126, %p127
      %p129 = scmp.ne.s32.totalorder %s115, %s116
      %p130 = scmp.eq.s32.totalorder %s19, 1
      %p131 = por %p129, %p130
      %p133 = scmp.ne.s32.totalorder %s116, %s132
      %p134 = scmp.eq.s32.totalorder %s19, 0
      %p135 = por %p133, %p134
      %p136 = scmp.le.s32.totalorder 1, %s13
      %p137 = scmp.lt.s32.totalorder %s13, 3
      %p138 = pnand %p136, %p137
      %p139 = pneg %p138
      // Predicated region
      $region9: #{spt_forward.1} parent=5 // pred_check
        _
      $region10: #{spt_forward.1} parent=5 // pred_check_branch
        %141 = sbr.rel (%p138) target = $region12
      $region11: #{spt_forward.1} parent=5 // pred_region
        %s142 = ssub.s32 %s13, 1
        // Predicated region
        $region13: #{spt_forward.1} parent=11 // pred_check
          %p143 = pneg %p60
        $region14: #{spt_forward.1} parent=11 // pred_check_branch
          %145 = sbr.rel (%p143) target = $region16
        $region15: #{spt_forward.1} parent=11 // pred_region
          _
        $region16: #{spt_forward.1} parent=11 // pred_fallthru
          _
        // Predicated region
        $region17: #{spt_forward.1} parent=11 // pred_check
          %p146 = pneg %p81
        $region18: #{spt_forward.1} parent=11 // pred_check_branch
          %148 = sbr.rel (%p146) target = $region20
        $region19: #{spt_forward.1} parent=11 // pred_region
          _
        $region20: #{spt_forward.1} parent=11 // pred_fallthru
          _
        // Predicated region
        $region21: #{spt_forward.1} parent=11 // pred_check
          %p149 = pneg %p102
        $region22: #{spt_forward.1} parent=11 // pred_check_branch
          %151 = sbr.rel (%p149) target = $region24
        $region23: #{spt_forward.1} parent=11 // pred_region
          _
        $region24: #{spt_forward.1} parent=11 // pred_fallthru
          _
      $region12: #{spt_forward.1} parent=5 // pred_fallthru
        _
      %p152 = scmp.lt.s32.totalorder %s13, 2
      // Predicated region
      $region25: #{spt_forward.1} parent=5 // pred_check
        %p153 = pneg %p152
      $region26: #{spt_forward.1} parent=5 // pred_check_branch
        %155 = sbr.rel (%p153) target = $region28
      $region27: #{spt_forward.1} parent=5 // pred_region
        // Predicated region
        $region29: #{spt_forward.1} parent=27 // pred_check
          %p156 = pneg %p33
        $region30: #{spt_forward.1} parent=27 // pred_check_branch
          %158 = sbr.rel (%p156) target = $region32
        $region31: #{spt_forward.1} parent=27 // pred_region
          %s159 = smul.u32 2, %s13
          %p160 = scmp.lt.s32.totalorder %s159, 3
          %s161 = scalar_select %p160, %s159, 3
          %s162 = smul.addr %s161, 2
          %s163 = smul.addr %s162, 8
          %s164 = scalar_lea.vmem %s0, %s163
          %s165 = smul.u32 2, %s13
        $region32: #{spt_forward.1} parent=27 // pred_fallthru
          _
      $region28: #{spt_forward.1} parent=5 // pred_fallthru
        _
      %p166 = scmp.le.s32.totalorder 1, %s13
      %p167 = scmp.lt.s32.totalorder %s13, 3
      %p168 = pnand %p166, %p167
      %p169 = pneg %p168
      // Predicated region
      $region33: #{spt_forward.1} parent=5 // pred_check
        _
      $region34: #{spt_forward.1} parent=5 // pred_check_branch
        %171 = sbr.rel (%p168) target = $region36
      $region35: #{spt_forward.1} parent=5 // pred_region
        %s172 = ssub.s32 %s13, 1
        %s173 = smul.u32 2, %s18
        %p174 = scmp.lt.s32.totalorder %s173, 3
        %s175 = scalar_select %p174, %s173, 3
        %s176 = smul.addr %s175, 2
        %s177 = smul.addr %s176, 8
        %s178 = scalar_lea.vmem %s0, %s177
        %p179 = pneg %p39
        %p180 = pneg %p36
        %p181 = pneg %p60
        %p182 = pneg %p57
        %p183 = pneg %p81
        %p184 = pneg %p78
        %p185 = pneg %p102
        %p186 = pneg %p99
        %p187 = pneg %p128
        %p188 = pneg %p125
        %s189 = sand.u32 %s115, 1
        %s190 = scalar_lea.sflag [#allocation3], %s189
        %s191 = sand.u32 %s115, 1
        %s192 = smul.addr %s191, 16
        %s193 = scalar_lea.vmem [#allocation2], %s192
        %s194 = smul.u32 2, %s18
        %p195 = scmp.lt.s32.totalorder %s194, 3
        %s196 = scalar_select %p195, %s194, 3
        %s197 = smul.addr %s196, 2
        %s198 = smul.addr %s197, 8
        %s199 = scalar_lea.vmem %s0, %s198
        %s200 = smul.u32 2, %s18
        %s201 = smul.u32 2, %s18
        %v202 = vld [vmem:[%s199] sm:$0xff]
        %v203 = vld [vmem:[%s199 + $0x8] sm:$0xff]
        %v204 = vld [vmem:[%s199 + $0x10] sm:$0xff]
        %v205 = vld [vmem:[%s199 + $0x18] sm:$0xff]
        %vm206 = vcmask 916480
        %v207 = vsel %vm206, %v203, 0.0
        %v208 = vadd.f32 %v202, %v207
        %209 = vadd.xlane.f32.xlu0 %v208
        %v210 = vpop.xlane.xlu0 %209
        %v211 = vsel %vm206, %v205, 0.0
        %v212 = vadd.f32 %v204, %v211
        %213 = vadd.xlane.f32.xlu0 %v212
        %v214 = vpop.xlane.xlu0 %213
        %v215 = vmul.f32 %v202, %v202
        %v216 = vmul.f32 %v203, %v203
        %v217 = vmul.f32 %v204, %v204
        %v218 = vmul.f32 %v205, %v205
        %v219 = vsel %vm206, %v216, 0.0
        %v220 = vadd.f32 %v215, %v219
        %221 = vadd.xlane.f32.xlu0 %v220
        %v222 = vpop.xlane.xlu0 %221
        %v223 = vsel %vm206, %v218, 0.0
        %v224 = vadd.f32 %v217, %v223
        %225 = vadd.xlane.f32.xlu0 %v224
        %v226 = vpop.xlane.xlu0 %225
        %v227 = vmul.f32 %v210, 0.004166667
        %v228 = vmul.f32 %v214, 0.004166667
        %v229 = vmul.f32 %v222, 0.004166667
        %v230 = vmul.f32 %v226, 0.004166667
        %v231 = vmul.f32 %v227, %v227
        %v232 = vmul.f32 %v228, %v228
        %v233 = vsub.f32 %v229, %v231
        %v234 = vsub.f32 %v230, %v232
        %v235 = vadd.f32 %v233, 1e-05
        %v236 = vadd.f32 %v234, 1e-05
        %v237 = vrsqrt.pop %v235
        %v238 = vrsqrt.pop %v236
        %v239 = vmul.f32 %v202, %v237
        %v240 = vmul.f32 %v203, %v237
        %v241 = vmul.f32 %v204, %v238
        %v242 = vmul.f32 %v205, %v238
        %v243 = vld [vmem:[%s1] sm:$0xff]
        %v244 = vld [vmem:[%s1 + $0x8] sm:$0xff]
        %v245 = vld [vmem:[%s1 + $0x10] sm:$0xff]
        %v246 = vld [vmem:[%s1 + $0x18] sm:$0xff]
        %v247 = vld [vmem:[%s1 + $0x20] sm:$0xff]
        %v248 = vld [vmem:[%s1 + $0x28] sm:$0xff]
        %v249 = vld [vmem:[%s1 + $0x30] sm:$0xff]
        %v250 = vld [vmem:[%s1 + $0x38] sm:$0xff]
        %v251 = vld [vmem:[%s1 + $0x40] sm:$0xff]
        %v252 = vld [vmem:[%s1 + $0x48] sm:$0xff]
        %v253 = vld [vmem:[%s1 + $0x50] sm:$0xff]
        %v254 = vld [vmem:[%s1 + $0x58] sm:$0xff]
        %v255 = vld [vmem:[%s1 + $0x60] sm:$0xff]
        %v256 = vld [vmem:[%s1 + $0x68] sm:$0xff]
        %v257 = vld [vmem:[%s1 + $0x70] sm:$0xff]
        %v258 = vld [vmem:[%s1 + $0x78] sm:$0xff]
        %v259 = vld [vmem:[%s1 + $0x80] sm:$0xff]
        %v260 = vld [vmem:[%s1 + $0x88] sm:$0xff]
        %v261 = vld [vmem:[%s1 + $0x90] sm:$0xff]
        %v262 = vld [vmem:[%s1 + $0x98] sm:$0xff]
        %v263 = vld [vmem:[%s1 + $0xa0] sm:$0xff]
        %v264 = vld [vmem:[%s1 + $0xa8] sm:$0xff]
        %v265 = vld [vmem:[%s1 + $0xb0] sm:$0xff]
        %v266 = vld [vmem:[%s1 + $0xb8] sm:$0xff]
        %v267 = vld [vmem:[%s1 + $0xc0] sm:$0xff]
        %v268 = vld [vmem:[%s1 + $0xc8] sm:$0xff]
        %v269 = vld [vmem:[%s1 + $0xd0] sm:$0xff]
        %v270 = vld [vmem:[%s1 + $0xd8] sm:$0xff]
        %v271 = vld [vmem:[%s1 + $0xe0] sm:$0xff]
        %v272 = vld [vmem:[%s1 + $0xe8] sm:$0xff]
        %v274 = vsel %vm206, %v240, 0
        %v277 = vsel %vm206, %v242, 0
        %279 = vmatprep.subr.mxu0 0.0
        %280 = vmatpush1.msra.mxu0 %v258
        %281 = vmatprep.subr.mxu0 0.0
        %282 = vmatpush1.msra.mxu0 %v257
        %283 = vmatprep.subr.mxu0 0.0
        %284 = vmatpush1.msra.mxu0 %v256
        %285 = vmatprep.subr.mxu0 0.0
        %286 = vmatpush1.msra.mxu0 %v255
        %287 = vmatprep.subr.mxu0 0.0
        %288 = vmatpush1.msra.mxu0 %v254
        %289 = vmatprep.subr.mxu0 0.0
        %290 = vmatpush1.msra.mxu0 %v253
        %291 = vmatprep.subr.mxu0 0.0
        %292 = vmatpush1.msra.mxu0 %v252
        %293 = vmatprep.subr.mxu0 0.0
        %294 = vmatpush1.msra.mxu0 %v251
        %295 = vmatprep.subr.mxu0 0.0
        %296 = vmatpush1.msra.mxu0 %v250
        %297 = vmatprep.subr.mxu0 0.0
        %298 = vmatpush1.msra.mxu0 %v249
        %299 = vmatprep.subr.mxu0 0.0
        %300 = vmatpush1.msra.mxu0 %v248
        %301 = vmatprep.subr.mxu0 0.0
        %302 = vmatpush1.msra.mxu0 %v247
        %303 = vmatprep.subr.mxu0 0.0
        %304 = vmatpush1.msra.mxu0 %v246
        %305 = vmatprep.subr.mxu0 0.0
        %306 = vmatpush1.msra.mxu0 %v245
        %307 = vmatprep.subr.mxu0 0.0
        %308 = vmatpush1.msra.mxu0 %v244
        %309 = vmatprep.subr.mxu0 0.0
        %310 = vmatpush1.msra.mxu0 %v243
        %311 = vmatprep.subr.mxu0 0.0
        %312 = vmatpush2.msra.mxu0 0.0
        %313 = vmatprep.subr.mxu0 0.0
        %314 = vmatpush2.msra.mxu0 0.0
        %315 = vmatprep.subr.mxu0 0.0
        %316 = vmatpush2.msra.mxu0 %v272
        %317 = vmatprep.subr.mxu0 0.0
        %318 = vmatpush2.msra.mxu0 %v271
        %319 = vmatprep.subr.mxu0 0.0
        %320 = vmatpush2.msra.mxu0 %v270
        %321 = vmatprep.subr.mxu0 0.0
        %322 = vmatpush2.msra.mxu0 %v269
        %323 = vmatprep.subr.mxu0 0.0
        %324 = vmatpush2.msra.mxu0 %v268
        %325 = vmatprep.subr.mxu0 0.0
        %326 = vmatpush2.msra.mxu0 %v267
        %327 = vmatprep.subr.mxu0 0.0
        %328 = vmatpush2.msra.mxu0 %v266
        %329 = vmatprep.subr.mxu0 0.0
        %330 = vmatpush2.msra.mxu0 %v265
        %331 = vmatprep.subr.mxu0 0.0
        %332 = vmatpush2.msra.mxu0 %v264
        %333 = vmatprep.subr.mxu0 0.0
        %334 = vmatpush2.msra.mxu0 %v263
        %335 = vmatprep.subr.mxu0 0.0
        %336 = vmatpush2.msra.mxu0 %v262
        %337 = vmatprep.subr.mxu0 0.0
        %338 = vmatpush2.msra.mxu0 %v261
        %339 = vmatprep.subr.mxu0 0.0
        %340 = vmatpush2.msra.mxu0 %v260
        %341 = vmatprep.subr.mxu0 0.0
        %342 = vmatpush2.msra.mxu0 %v259
        %343 = vmatprep.mubr.f32.mxu0 %v274
        %344 = vmatmul.mubr.f32.gmra.mxu0 %v239
        %v345 = vpop.f32.mrf.mxu0
        %v346 = vadd.f32 0.0, %v345
        %v347 = vpop.f32.mrf.mxu0
        %348 = vmatprep.mubr.f32.mxu0 %v277
        %349 = vmatmul.mubr.f32.gmra.mxu0 %v241
        %v350 = vpop.f32.mrf.mxu0
        %v351 = vadd.f32 0.0, %v350
        %v352 = vpop.f32.mrf.mxu0
        %353 = vdwg.mxu0
        %v354 = vmul.f32 %v227, %v237
        %v355 = vmul.f32 %v228, %v238
        %v356 = vld [vmem:[%s2] sm:$0x1]
        %v358 = vlaneseq
        %v359 = vshrl.u32 %v358, 7
        %v360 = vsub.s32 0, %v359
        %v361 = vrot.slane %v356, %v360
        %v363 = vmul.f32 %v354, %v361
        %v364 = vmul.f32 %v355, %v361
        %v365 = vsub.f32 %v346, %v363
        %v366 = vsub.f32 %v351, %v364
        %v367 = vld [vmem:[%s3] sm:$0x1]
        %v369 = vlaneseq
        %v370 = vshrl.u32 %v369, 7
        %v371 = vsub.s32 0, %v370
        %v372 = vrot.slane %v367, %v371
        %v374 = vadd.f32 %v365, %v372
        %v375 = vadd.f32 %v366, %v372
        %vm376 = vcmask 261120
        %377 = vst.msk [vmem:[%s193] sm:$0xff] %vm376, %v374
        %378 = vst.msk [vmem:[%s193 + $0x8] sm:$0xff] %vm376, %v375
        %s379 = sand.u32 %s115, 1
        %s380 = scalar_lea.sflag [#allocation3], %s379
        %s381 = sand.u32 %s115, 1
        %s382 = smul.addr %s381, 16
        %s383 = scalar_lea.vmem [#allocation2], %s382
        // Predicated region
        $region37: #{spt_forward.1} parent=35 // pred_check
          %p384 = pneg %p125
        $region38: #{spt_forward.1} parent=35 // pred_check_branch
          %386 = sbr.rel (%p384) target = $region40
        $region39: #{spt_forward.1} parent=35 // pred_region
          %s387 = smul.u32 2, %s18
          %s389 = ssub.s32 256, 256
          %390 = vsyncadd %s380, %s389
          %s391 = smul.addr %s387, 128
          %s392 = scalar_lea.hbm %s4, %s391
          %s393 = sshll.u32 %s383, 4
          %s394 = int_to_ptr.vmem [resolvable:$true] %s393
          %399 = dma.vmem_to_hbm [thread:$0]  %s394, 256, %s392, %s380, 128, 128, 8
        $region40: #{spt_forward.1} parent=35 // pred_fallthru
          _
      $region36: #{spt_forward.1} parent=5 // pred_fallthru
        _
      %p400 = scmp.le.s32.totalorder 2, %s13
      // Predicated region
      $region41: #{spt_forward.1} parent=5 // pred_check
        %p401 = pneg %p400
      $region42: #{spt_forward.1} parent=5 // pred_check_branch
        %403 = sbr.rel (%p401) target = $region44
      $region43: #{spt_forward.1} parent=5 // pred_region
        %s404 = ssub.s32 %s13, 2
        // Predicated region
        $region45: #{spt_forward.1} parent=43 // pred_check
          %p405 = pneg %p131
        $region46: #{spt_forward.1} parent=43 // pred_check_branch
          %407 = sbr.rel (%p405) target = $region48
        $region47: #{spt_forward.1} parent=43 // pred_region
          %s408 = sand.u32 %s116, 1
          %s409 = scalar_lea.sflag [#allocation3], %s408
          %s410 = sand.u32 %s116, 1
          %s411 = smul.addr %s410, 16
          %s412 = scalar_lea.vmem [#allocation2], %s411
          %413 = dma.done %s409, 256
        $region48: #{spt_forward.1} parent=43 // pred_fallthru
          _
      $region44: #{spt_forward.1} parent=5 // pred_fallthru
        _
    $region6: #{spt_forward.1} parent=1 // loop_footer
      %s17 = sadd.s32 1, %s13
    $region7: #{spt_forward.1} parent=1 // loop_footer_branch
      %12 = sbr.rel target = $region3
    $region8: #{spt_forward.1} parent=1 // loop_exit
      _
    %414 = vsyncpa [#allocation3], 1
    %s415 = scalar_lea.sflag [#allocation3], 1
    %416 = vsyncpa %s415, 1

</llo_original>
